<compile_context>
chip_gen: v5e
topology: v5e:2x2
jax: 0.10.0
libtpu: 0.0.40
codegen_flags: <defaults>
</compile_context>

<pallas_src>
import numpy as np
import jax
import jax.numpy as jnp
from jax.experimental import pallas as pl
from jax.experimental.pallas import tpu as pltpu

_EPS = 1e-5


def _choose_hw_tile(hw):
    """Largest tile <= 8192 that divides hw and is a multiple of 128 (else the full hw)."""
    for t in (8192, 4096, 2048, 1024, 512, 256, 128):
        if hw % t == 0:
            return t
    return hw


def _make_stats1_kernel(Kin, Kou):
    """Accumulate per-lane partial sums of h = conv1(x) and h**2 (per BN1 channel)."""

    def kernel(w1_ref, x_ref, ps_ref):
        @pl.when((pl.program_id(0) == 0) & (pl.program_id(1) == 0))
        def _init():
            ps_ref[...] = jnp.zeros_like(ps_ref)

        x = x_ref[0].astype(jnp.float32)                      # (Kin, HWt), lane-dense
        for ko in range(Kou):
            h = w1_ref[ko * Kin] * x[0:1, :]
            for ki in range(1, Kin):
                h = h + w1_ref[ko * Kin + ki] * x[ki:ki + 1, :]
            ps_ref[ko:ko + 1, :] = ps_ref[ko:ko + 1, :] + h
            ps_ref[Kou + ko:Kou + ko + 1, :] = ps_ref[Kou + ko:Kou + ko + 1, :] + h * h

    return kernel


def _make_stats2_kernel(Kin, Kou):
    """Accumulate per-lane partial sums of y = conv2(relu(BN1-folded conv1(x))) and y**2.

    BN1 is pre-folded into w1f (scaled rows) + s1 (per-channel shift) by the wrapper.
    """

    def kernel(w1f_ref, s1_ref, w2_ref, x_ref, ps_ref):
        @pl.when((pl.program_id(0) == 0) & (pl.program_id(1) == 0))
        def _init():
            ps_ref[...] = jnp.zeros_like(ps_ref)

        x = x_ref[0].astype(jnp.float32)                      # (Kin, HWt)
        r_rows = []
        for ko in range(Kou):
            h = w1f_ref[ko * Kin] * x[0:1, :]
            for ki in range(1, Kin):
                h = h + w1f_ref[ko * Kin + ki] * x[ki:ki + 1, :]
            r_rows.append(jnp.maximum(h + s1_ref[ko], 0.0))   # BN1 shift + ReLU
        for ki in range(Kin):
            y = w2_ref[ki * Kou] * r_rows[0]
            for ko in range(1, Kou):
                y = y + w2_ref[ki * Kou + ko] * r_rows[ko]
            ps_ref[ki:ki + 1, :] = ps_ref[ki:ki + 1, :] + y
            ps_ref[Kin + ki:Kin + ki + 1, :] = ps_ref[Kin + ki:Kin + ki + 1, :] + y * y

    return kernel


def _make_apply_kernel(Kin, Kou):
    """out = x * sigmoid( BN2-folded conv2( relu( BN1-folded conv1(x) ) ) )."""

    def kernel(w1f_ref, s1_ref, w2f_ref, s2_ref, x_ref, o_ref):
        x = x_ref[0].astype(jnp.float32)                      # (Kin, HWt)
        r_rows = []
        for ko in range(Kou):
            h = w1f_ref[ko * Kin] * x[0:1, :]
            for ki in range(1, Kin):
                h = h + w1f_ref[ko * Kin + ki] * x[ki:ki + 1, :]
            r_rows.append(jnp.maximum(h + s1_ref[ko], 0.0))
        for ki in range(Kin):
            z = w2f_ref[ki * Kou] * r_rows[0]
            for ko in range(1, Kou):
                z = z + w2f_ref[ki * Kou + ko] * r_rows[ko]
            gate = jax.nn.sigmoid(z + s2_ref[ki])             # EUP exp, off the VALU path
            o_ref[0, ki:ki + 1, :] = (x[ki:ki + 1, :] * gate).astype(o_ref.dtype)

    return kernel


def atac_unit_pallas(x_nchw, w1, g1, b1, w2, g2, b2, *, hw_tile=None):
    """x_nchw: (N, Kin, H, W).  w1: (Kou, Kin), w2: (Kin, Kou) (1x1 Conv2d weights with the
    trailing spatial dims squeezed).  g*/b*: BatchNorm affine params.  Returns (N, Kin, H, W)."""
    N, Kin, H, W = x_nchw.shape
    Kou = w1.shape[0]
    HW = H * W
    M = N * HW

    if hw_tile is None:
        hw_tile = _choose_hw_tile(HW)
    assert HW % hw_tile == 0
    n_hw_tiles = HW // hw_tile

    # Free (contiguous) reshape: NCHW -> (N, C, H*W).  Channels land on sublanes,
    # pixels on lanes -- no transposes, lane-dense tiles.
    x3 = x_nchw.reshape(N, Kin, HW)

    w1_f32 = w1.astype(jnp.float32)
    w2_f32 = w2.astype(jnp.float32)
    w1_flat = w1_f32.reshape(Kou * Kin)                       # index [ko*Kin + ki]

    smem_spec = pl.BlockSpec(memory_space=pltpu.MemorySpace.SMEM)
    x_spec = pl.BlockSpec((1, Kin, hw_tile), lambda n, t: (n, 0, t))
    o_spec = pl.BlockSpec((1, Kin, hw_tile), lambda n, t: (n, 0, t))
    ps1_spec = pl.BlockSpec((2 * Kou, hw_tile), lambda n, t: (0, 0))   # resident accumulator
    ps2_spec = pl.BlockSpec((2 * Kin, hw_tile), lambda n, t: (0, 0))   # resident accumulator

    grid = (N, n_hw_tiles)
    reduce_params = pltpu.CompilerParams(
        dimension_semantics=("arbitrary", "arbitrary"))
    par_params = pltpu.CompilerParams(
        dimension_semantics=("parallel", "parallel"))

    # ---- pass 1: BN1 batch statistics (per-lane partial sums of h and h^2) ----
    ps1 = pl.pallas_call(
        _make_stats1_kernel(Kin, Kou),
        out_shape=jax.ShapeDtypeStruct((2 * Kou, hw_tile), jnp.float32),
        grid=grid,
        in_specs=[smem_spec, x_spec],
        out_specs=ps1_spec,
        compiler_params=reduce_params,
    )(w1_flat, x3)

    sum1 = jnp.sum(ps1[:Kou], axis=1)
    sq1 = jnp.sum(ps1[Kou:], axis=1)
    mean1 = sum1 / M
    var1 = jnp.maximum(sq1 / M - mean1 * mean1, 0.0)            # biased variance
    scale1 = g1.astype(jnp.float32) * jax.lax.rsqrt(var1 + _EPS)
    shift1 = b1.astype(jnp.float32) - mean1 * scale1
    # Fold BN1 scale straight into the conv1 rows (tiny wrapper-side math, exact same affine).
    w1f_flat = (scale1[:, None] * w1_f32).reshape(Kou * Kin)

    # ---- pass 2: BN2 batch statistics ----
    w2_flat = w2_f32.reshape(Kin * Kou)                        # index [ki*Kou + ko]
    ps2 = pl.pallas_call(
        _make_stats2_kernel(Kin, Kou),
        out_shape=jax.ShapeDtypeStruct((2 * Kin, hw_tile), jnp.float32),
        grid=grid,
        in_specs=[smem_spec, smem_spec, smem_spec, x_spec],
        out_specs=ps2_spec,
        compiler_params=reduce_params,
    )(w1f_flat, shift1, w2_flat, x3)

    sum2 = jnp.sum(ps2[:Kin], axis=1)
    sq2 = jnp.sum(ps2[Kin:], axis=1)
    mean2 = sum2 / M
    var2 = jnp.maximum(sq2 / M - mean2 * mean2, 0.0)
    scale2 = g2.astype(jnp.float32) * jax.lax.rsqrt(var2 + _EPS)
    shift2 = b2.astype(jnp.float32) - mean2 * scale2
    w2f_flat = (scale2[:, None] * w2_f32).reshape(Kin * Kou)

    # ---- pass 3: apply (fully parallel over tiles; uses both TCs on v7x) ----
    out3 = pl.pallas_call(
        _make_apply_kernel(Kin, Kou),
        out_shape=jax.ShapeDtypeStruct((N, Kin, HW), x_nchw.dtype),
        grid=grid,
        in_specs=[smem_spec, smem_spec, smem_spec, smem_spec, x_spec],
        out_specs=o_spec,
        compiler_params=par_params,
    )(w1f_flat, shift1, w2f_flat, shift2, x3)

    return out3.reshape(N, Kin, H, W)


def atac_unit_ref(x_nchw, w1, g1, b1, w2, g2, b2):
    """Pure-JAX reference mirroring the PyTorch forward (training-mode BN)."""
    N, Kin, H, W = x_nchw.shape
    Kou = w1.shape[0]
    x = jnp.transpose(x_nchw, (0, 2, 3, 1)).reshape(-1, Kin).astype(jnp.float32)
    h = x @ w1.T
    m1 = h.mean(0, keepdims=True)
    v1 = ((h - m1) ** 2).mean(0, keepdims=True)
    h = (h - m1) / jnp.sqrt(v1 + _EPS) * g1.reshape(1, Kou) + b1.reshape(1, Kou)
    h = jnp.maximum(h, 0.0)
    y = h @ w2.T
    m2 = y.mean(0, keepdims=True)
    v2 = ((y - m2) ** 2).mean(0, keepdims=True)
    y = (y - m2) / jnp.sqrt(v2 + _EPS) * g2.reshape(1, Kin) + b2.reshape(1, Kin)
    out = x * jax.nn.sigmoid(y)
    return jnp.transpose(out.reshape(N, H, W, Kin), (0, 3, 1, 2))


if __name__ == "__main__":
    # Small shapes: batch=2, Kin=4 channels, 16x16 spatial.  Kred=1 => Kou=Kin.
    N, Kin, H, W = 2, 4, 16, 16
    Kou = int(np.maximum(np.ceil(Kin / 1), 1))

    key = jax.random.PRNGKey(0)
    kx, kw1, kw2, kg1, kb1, kg2, kb2 = jax.random.split(key, 7)

    x = jax.random.normal(kx, (N, Kin, H, W), dtype=jnp.float32)

    # Deterministic synthetic parameters (Conv2d 1x1 weights with spatial dims squeezed).
    w1 = jax.random.normal(kw1, (Kou, Kin), dtype=jnp.float32) * 0.5   # conv1.weight[:, :, 0, 0]
    w2 = jax.random.normal(kw2, (Kin, Kou), dtype=jnp.float32) * 0.5   # conv2.weight[:, :, 0, 0]
    g1 = 1.0 + 0.1 * jax.random.normal(kg1, (Kou,), dtype=jnp.float32)  # BN1 gamma
    b1 = 0.1 * jax.random.normal(kb1, (Kou,), dtype=jnp.float32)        # BN1 beta
    g2 = 1.0 + 0.1 * jax.random.normal(kg2, (Kin,), dtype=jnp.float32)  # BN2 gamma
    b2 = 0.1 * jax.random.normal(kb2, (Kin,), dtype=jnp.float32)        # BN2 beta

    out = atac_unit_pallas(x, w1, g1, b1, w2, g2, b2)
    out = jax.block_until_ready(out)

    ref = atac_unit_ref(x, w1, g1, b1, w2, g2, b2)
    np.testing.assert_allclose(np.asarray(out), np.asarray(ref), rtol=3e-5, atol=3e-5)

    print("KERNEL_OK")
</pallas_src>

<mosaic_0001>
module attributes {stable_mosaic.version = 11 : i64} {
  func.func @kernel(%arg0: i32, %arg1: i32, %arg2: memref<16xf32, #tpu.memory_space<smem>>, %arg3: memref<1x4x256xf32, #tpu.memory_space<vmem>>, %arg4: memref<8x256xf32, #tpu.memory_space<vmem>>) attributes {dimension_semantics = [#tpu.dimension_semantics<arbitrary>, #tpu.dimension_semantics<arbitrary>], iteration_bounds = array<i64: 2, 1>, scalar_prefetch = 0 : i64, scratch_operands = 0 : i64, tpu.core_type = #tpu.core_type<tc>, window_params = [{transform_indices = @transform_0, window_bounds = array<i64: 16>}, {transform_indices = @transform_1, window_bounds = array<i64: 1, 4, 256>}, {pipeline_mode = #tpu.pipeline_mode<synchronous>, transform_indices = @transform_2, window_bounds = array<i64: 8, 256>}]} {
    %c0_i32 = arith.constant 0 : i32
    %0 = arith.cmpi eq, %arg0, %c0_i32 : i32
    %c0_i32_0 = arith.constant 0 : i32
    %1 = arith.cmpi eq, %arg1, %c0_i32_0 : i32
    %2 = arith.andi %0, %1 : i1
    %3 = arith.extui %2 : i1 to i32
    %c0_i32_1 = arith.constant 0 : i32
    %4 = arith.cmpi ne, %3, %c0_i32_1 : i32
    scf.if %4 {
      %cst = arith.constant 0.000000e+00 : f32
      %111 = vector.broadcast %cst : f32 to vector<8x256xf32>
      %c0_37 = arith.constant 0 : index
      %c0_38 = arith.constant 0 : index
      %112 = vector.load %arg4[%c0_37, %c0_38] : memref<8x256xf32, #tpu.memory_space<vmem>>, vector<8x256xf32>
      tpu.vector_store %arg4[%c0_37, %c0_38], %111 {strides = array<i32>} : memref<8x256xf32, #tpu.memory_space<vmem>>, vector<8x256xf32>,
    } else {
    }
    %c0 = arith.constant 0 : index
    %c0_2 = arith.constant 0 : index
    %c0_3 = arith.constant 0 : index
    %5 = vector.load %arg3[%c0, %c0_2, %c0_3] : memref<1x4x256xf32, #tpu.memory_space<vmem>>, vector<1x4x256xf32>
    %6 = vector.shape_cast %5 : vector<1x4x256xf32> to vector<4x256xf32>
    %c0_4 = arith.constant 0 : index
    %7 = memref.load %arg2[%c0_4] : memref<16xf32, #tpu.memory_space<smem>>
    %8 = vector.extract_strided_slice %6 {offsets = [0, 0], sizes = [1, 256], strides = [1, 1]} : vector<4x256xf32> to vector<1x256xf32>
    %9 = vector.broadcast %7 : f32 to vector<1x256xf32>
    %10 = arith.mulf %9, %8 : vector<1x256xf32>
    %c1 = arith.constant 1 : index
    %11 = memref.load %arg2[%c1] : memref<16xf32, #tpu.memory_space<smem>>
    %12 = vector.extract_strided_slice %6 {offsets = [1, 0], sizes = [1, 256], strides = [1, 1]} : vector<4x256xf32> to vector<1x256xf32>
    %13 = vector.broadcast %11 : f32 to vector<1x256xf32>
    %14 = arith.mulf %13, %12 : vector<1x256xf32>
    %15 = arith.addf %10, %14 : vector<1x256xf32>
    %c2 = arith.constant 2 : index
    %16 = memref.load %arg2[%c2] : memref<16xf32, #tpu.memory_space<smem>>
    %17 = vector.extract_strided_slice %6 {offsets = [2, 0], sizes = [1, 256], strides = [1, 1]} : vector<4x256xf32> to vector<1x256xf32>
    %18 = vector.broadcast %16 : f32 to vector<1x256xf32>
    %19 = arith.mulf %18, %17 : vector<1x256xf32>
    %20 = arith.addf %15, %19 : vector<1x256xf32>
    %c3 = arith.constant 3 : index
    %21 = memref.load %arg2[%c3] : memref<16xf32, #tpu.memory_space<smem>>
    %22 = vector.extract_strided_slice %6 {offsets = [3, 0], sizes = [1, 256], strides = [1, 1]} : vector<4x256xf32> to vector<1x256xf32>
    %23 = vector.broadcast %21 : f32 to vector<1x256xf32>
    %24 = arith.mulf %23, %22 : vector<1x256xf32>
    %25 = arith.addf %20, %24 : vector<1x256xf32>
    %c0_5 = arith.constant 0 : index
    %c0_6 = arith.constant 0 : index
    %26 = vector.load %arg4[%c0_5, %c0_6] : memref<8x256xf32, #tpu.memory_space<vmem>>, vector<1x256xf32>
    %27 = arith.addf %26, %25 : vector<1x256xf32>
    %c0_7 = arith.constant 0 : index
    %c0_8 = arith.constant 0 : index
    %28 = vector.load %arg4[%c0_7, %c0_8] : memref<8x256xf32, #tpu.memory_space<vmem>>, vector<1x256xf32>
    tpu.vector_store %arg4[%c0_7, %c0_8], %27 {strides = array<i32>} : memref<8x256xf32, #tpu.memory_space<vmem>>, vector<1x256xf32>,
    %c4 = arith.constant 4 : index
    %c0_9 = arith.constant 0 : index
    %29 = vector.load %arg4[%c4, %c0_9] : memref<8x256xf32, #tpu.memory_space<vmem>>, vector<1x256xf32>
    %30 = arith.mulf %25, %25 : vector<1x256xf32>
    %31 = arith.addf %29, %30 : vector<1x256xf32>
    %c4_10 = arith.constant 4 : index
    %c0_11 = arith.constant 0 : index
    %32 = vector.load %arg4[%c4_10, %c0_11] : memref<8x256xf32, #tpu.memory_space<vmem>>, vector<1x256xf32>
    tpu.vector_store %arg4[%c4_10, %c0_11], %31 {strides = array<i32>} : memref<8x256xf32, #tpu.memory_space<vmem>>, vector<1x256xf32>,
    %c4_12 = arith.constant 4 : index
    %33 = memref.load %arg2[%c4_12] : memref<16xf32, #tpu.memory_space<smem>>
    %34 = vector.extract_strided_slice %6 {offsets = [0, 0], sizes = [1, 256], strides = [1, 1]} : vector<4x256xf32> to vector<1x256xf32>
    %35 = vector.broadcast %33 : f32 to vector<1x256xf32>
    %36 = arith.mulf %35, %34 : vector<1x256xf32>
    %c5 = arith.constant 5 : index
    %37 = memref.load %arg2[%c5] : memref<16xf32, #tpu.memory_space<smem>>
    %38 = vector.extract_strided_slice %6 {offsets = [1, 0], sizes = [1, 256], strides = [1, 1]} : vector<4x256xf32> to vector<1x256xf32>
    %39 = vector.broadcast %37 : f32 to vector<1x256xf32>
    %40 = arith.mulf %39, %38 : vector<1x256xf32>
    %41 = arith.addf %36, %40 : vector<1x256xf32>
    %c6 = arith.constant 6 : index
    %42 = memref.load %arg2[%c6] : memref<16xf32, #tpu.memory_space<smem>>
    %43 = vector.extract_strided_slice %6 {offsets = [2, 0], sizes = [1, 256], strides = [1, 1]} : vector<4x256xf32> to vector<1x256xf32>
    %44 = vector.broadcast %42 : f32 to vector<1x256xf32>
    %45 = arith.mulf %44, %43 : vector<1x256xf32>
    %46 = arith.addf %41, %45 : vector<1x256xf32>
    %c7 = arith.constant 7 : index
    %47 = memref.load %arg2[%c7] : memref<16xf32, #tpu.memory_space<smem>>
    %48 = vector.extract_strided_slice %6 {offsets = [3, 0], sizes = [1, 256], strides = [1, 1]} : vector<4x256xf32> to vector<1x256xf32>
    %49 = vector.broadcast %47 : f32 to vector<1x256xf32>
    %50 = arith.mulf %49, %48 : vector<1x256xf32>
    %51 = arith.addf %46, %50 : vector<1x256xf32>
    %c1_13 = arith.constant 1 : index
    %c0_14 = arith.constant 0 : index
    %52 = vector.load %arg4[%c1_13, %c0_14] : memref<8x256xf32, #tpu.memory_space<vmem>>, vector<1x256xf32>
    %53 = arith.addf %52, %51 : vector<1x256xf32>
    %c1_15 = arith.constant 1 : index
    %c0_16 = arith.constant 0 : index
    %54 = vector.load %arg4[%c1_15, %c0_16] : memref<8x256xf32, #tpu.memory_space<vmem>>, vector<1x256xf32>
    tpu.vector_store %arg4[%c1_15, %c0_16], %53 {strides = array<i32>} : memref<8x256xf32, #tpu.memory_space<vmem>>, vector<1x256xf32>,
    %c5_17 = arith.constant 5 : index
    %c0_18 = arith.constant 0 : index
    %55 = vector.load %arg4[%c5_17, %c0_18] : memref<8x256xf32, #tpu.memory_space<vmem>>, vector<1x256xf32>
    %56 = arith.mulf %51, %51 : vector<1x256xf32>
    %57 = arith.addf %55, %56 : vector<1x256xf32>
    %c5_19 = arith.constant 5 : index
    %c0_20 = arith.constant 0 : index
    %58 = vector.load %arg4[%c5_19, %c0_20] : memref<8x256xf32, #tpu.memory_space<vmem>>, vector<1x256xf32>
    tpu.vector_store %arg4[%c5_19, %c0_20], %57 {strides = array<i32>} : memref<8x256xf32, #tpu.memory_space<vmem>>, vector<1x256xf32>,
    %c8 = arith.constant 8 : index
    %59 = memref.load %arg2[%c8] : memref<16xf32, #tpu.memory_space<smem>>
    %60 = vector.extract_strided_slice %6 {offsets = [0, 0], sizes = [1, 256], strides = [1, 1]} : vector<4x256xf32> to vector<1x256xf32>
    %61 = vector.broadcast %59 : f32 to vector<1x256xf32>
    %62 = arith.mulf %61, %60 : vector<1x256xf32>
    %c9 = arith.constant 9 : index
    %63 = memref.load %arg2[%c9] : memref<16xf32, #tpu.memory_space<smem>>
    %64 = vector.extract_strided_slice %6 {offsets = [1, 0], sizes = [1, 256], strides = [1, 1]} : vector<4x256xf32> to vector<1x256xf32>
    %65 = vector.broadcast %63 : f32 to vector<1x256xf32>
    %66 = arith.mulf %65, %64 : vector<1x256xf32>
    %67 = arith.addf %62, %66 : vector<1x256xf32>
    %c10 = arith.constant 10 : index
    %68 = memref.load %arg2[%c10] : memref<16xf32, #tpu.memory_space<smem>>
    %69 = vector.extract_strided_slice %6 {offsets = [2, 0], sizes = [1, 256], strides = [1, 1]} : vector<4x256xf32> to vector<1x256xf32>
    %70 = vector.broadcast %68 : f32 to vector<1x256xf32>
    %71 = arith.mulf %70, %69 : vector<1x256xf32>
    %72 = arith.addf %67, %71 : vector<1x256xf32>
    %c11 = arith.constant 11 : index
    %73 = memref.load %arg2[%c11] : memref<16xf32, #tpu.memory_space<smem>>
    %74 = vector.extract_strided_slice %6 {offsets = [3, 0], sizes = [1, 256], strides = [1, 1]} : vector<4x256xf32> to vector<1x256xf32>
    %75 = vector.broadcast %73 : f32 to vector<1x256xf32>
    %76 = arith.mulf %75, %74 : vector<1x256xf32>
    %77 = arith.addf %72, %76 : vector<1x256xf32>
    %c2_21 = arith.constant 2 : index
    %c0_22 = arith.constant 0 : index
    %78 = vector.load %arg4[%c2_21, %c0_22] : memref<8x256xf32, #tpu.memory_space<vmem>>, vector<1x256xf32>
    %79 = arith.addf %78, %77 : vector<1x256xf32>
    %c2_23 = arith.constant 2 : index
    %c0_24 = arith.constant 0 : index
    %80 = vector.load %arg4[%c2_23, %c0_24] : memref<8x256xf32, #tpu.memory_space<vmem>>, vector<1x256xf32>
    tpu.vector_store %arg4[%c2_23, %c0_24], %79 {strides = array<i32>} : memref<8x256xf32, #tpu.memory_space<vmem>>, vector<1x256xf32>,
    %c6_25 = arith.constant 6 : index
    %c0_26 = arith.constant 0 : index
    %81 = vector.load %arg4[%c6_25, %c0_26] : memref<8x256xf32, #tpu.memory_space<vmem>>, vector<1x256xf32>
    %82 = arith.mulf %77, %77 : vector<1x256xf32>
    %83 = arith.addf %81, %82 : vector<1x256xf32>
    %c6_27 = arith.constant 6 : index
    %c0_28 = arith.constant 0 : index
    %84 = vector.load %arg4[%c6_27, %c0_28] : memref<8x256xf32, #tpu.memory_space<vmem>>, vector<1x256xf32>
    tpu.vector_store %arg4[%c6_27, %c0_28], %83 {strides = array<i32>} : memref<8x256xf32, #tpu.memory_space<vmem>>, vector<1x256xf32>,
    %c12 = arith.constant 12 : index
    %85 = memref.load %arg2[%c12] : memref<16xf32, #tpu.memory_space<smem>>
    %86 = vector.extract_strided_slice %6 {offsets = [0, 0], sizes = [1, 256], strides = [1, 1]} : vector<4x256xf32> to vector<1x256xf32>
    %87 = vector.broadcast %85 : f32 to vector<1x256xf32>
    %88 = arith.mulf %87, %86 : vector<1x256xf32>
    %c13 = arith.constant 13 : index
    %89 = memref.load %arg2[%c13] : memref<16xf32, #tpu.memory_space<smem>>
    %90 = vector.extract_strided_slice %6 {offsets = [1, 0], sizes = [1, 256], strides = [1, 1]} : vector<4x256xf32> to vector<1x256xf32>
    %91 = vector.broadcast %89 : f32 to vector<1x256xf32>
    %92 = arith.mulf %91, %90 : vector<1x256xf32>
    %93 = arith.addf %88, %92 : vector<1x256xf32>
    %c14 = arith.constant 14 : index
    %94 = memref.load %arg2[%c14] : memref<16xf32, #tpu.memory_space<smem>>
    %95 = vector.extract_strided_slice %6 {offsets = [2, 0], sizes = [1, 256], strides = [1, 1]} : vector<4x256xf32> to vector<1x256xf32>
    %96 = vector.broadcast %94 : f32 to vector<1x256xf32>
    %97 = arith.mulf %96, %95 : vector<1x256xf32>
    %98 = arith.addf %93, %97 : vector<1x256xf32>
    %c15 = arith.constant 15 : index
    %99 = memref.load %arg2[%c15] : memref<16xf32, #tpu.memory_space<smem>>
    %100 = vector.extract_strided_slice %6 {offsets = [3, 0], sizes = [1, 256], strides = [1, 1]} : vector<4x256xf32> to vector<1x256xf32>
    %101 = vector.broadcast %99 : f32 to vector<1x256xf32>
    %102 = arith.mulf %101, %100 : vector<1x256xf32>
    %103 = arith.addf %98, %102 : vector<1x256xf32>
    %c3_29 = arith.constant 3 : index
    %c0_30 = arith.constant 0 : index
    %104 = vector.load %arg4[%c3_29, %c0_30] : memref<8x256xf32, #tpu.memory_space<vmem>>, vector<1x256xf32>
    %105 = arith.addf %104, %103 : vector<1x256xf32>
    %c3_31 = arith.constant 3 : index
    %c0_32 = arith.constant 0 : index
    %106 = vector.load %arg4[%c3_31, %c0_32] : memref<8x256xf32, #tpu.memory_space<vmem>>, vector<1x256xf32>
    tpu.vector_store %arg4[%c3_31, %c0_32], %105 {strides = array<i32>} : memref<8x256xf32, #tpu.memory_space<vmem>>, vector<1x256xf32>,
    %c7_33 = arith.constant 7 : index
    %c0_34 = arith.constant 0 : index
    %107 = vector.load %arg4[%c7_33, %c0_34] : memref<8x256xf32, #tpu.memory_space<vmem>>, vector<1x256xf32>
    %108 = arith.mulf %103, %103 : vector<1x256xf32>
    %109 = arith.addf %107, %108 : vector<1x256xf32>
    %c7_35 = arith.constant 7 : index
    %c0_36 = arith.constant 0 : index
    %110 = vector.load %arg4[%c7_35, %c0_36] : memref<8x256xf32, #tpu.memory_space<vmem>>, vector<1x256xf32>
    tpu.vector_store %arg4[%c7_35, %c0_36], %109 {strides = array<i32>} : memref<8x256xf32, #tpu.memory_space<vmem>>, vector<1x256xf32>,
    return
  }
  func.func @transform_0(%arg0: i32, %arg1: i32) -> i32 {
    %c0_i32 = arith.constant 0 : i32
    %c0_i32_0 = arith.constant 0 : i32
    return %c0_i32 : i32
  }
  func.func @transform_1(%arg0: i32, %arg1: i32) -> (i32, i32, i32) {
    %c0_i32 = arith.constant 0 : i32
    %c0_i32_0 = arith.constant 0 : i32
    return %arg0, %c0_i32, %arg1 : i32, i32, i32
  }
  func.func @transform_2(%arg0: i32, %arg1: i32) -> (i32, i32) {
    %c0_i32 = arith.constant 0 : i32
    %c0_i32_0 = arith.constant 0 : i32
    %c0_i32_1 = arith.constant 0 : i32
    return %c0_i32, %c0_i32_0 : i32, i32
  }
}

</mosaic_0001>

<llo_original>
// kernel: tpu_custom_call.1
$region0: #{tpu_custom_call.1}
  #allocation0 [shape = 'u32[]', space=smem, size = 0x4, offset = 0x4, fixed_abs, tag = 'smem constant byte address 0x4 - core index']
  #allocation1 [shape = 'u32[72,128]{1,0:T(1,128)}', space=vmem, size = 0x9000, scoped, tag = 'internal scratch']
  %s0 = inlined_call_operand.hbm [shape: f32[16], index: 0, kind: input, shape index: {}]
  %s1 = inlined_call_operand.hbm [shape: f32[2,4,256], index: 1, kind: input, shape index: {}]
  %s2 = inlined_call_operand.hbm [shape: f32[8,256], index: 2, kind: output, shape index: {}]
  %s3 = sld [smem:[#allocation0]]
  $region53: #{tpu_custom_call.1} parent=0
    _
  %s5 = ssub.s32 1, %s3
  %s6 = scalar_select 0, %s5, %s3
  $region1: #{tpu_custom_call.1} parent=0
    #allocation2 [shape = 'u8[512]{0}', space=smem, size = 0x200, scoped, tag = 'input window, operand 0, single buffered']
    #allocation3 [shape = 's32[2]{0}', space=sflag, size = 0x8, scoped, tag = 'scoped memory for tpu_custom_call.1']
    #allocation4 [shape = 's32[2]{0}', space=sflag, size = 0x8, scoped, tag = 'scoped memory for tpu_custom_call.1']
    #allocation5 [shape = 's32[2]{0}', space=sflag, size = 0x8, scoped, tag = 'scoped memory for tpu_custom_call.1']
    #allocation6 [shape = 'u8[8192]{0}', space=vmem, size = 0x2000, scoped, tag = 'input window, operand 1']
    #allocation7 [shape = 'u8[8192]{0}', space=vmem, size = 0x2000, scoped, tag = 'output window, operand 0, single buffered']
    %7 = vsyncpa [#allocation5], 0
    %8 = vsyncpa [#allocation3], 0
    %s9 = scalar_lea.sflag [#allocation3], 1
    %10 = vsyncpa %s9, 0
    %11 = vsyncpa [#allocation4], 0
    loop: start=0, step=1, limit=4
    $region2: #{tpu_custom_call.1} parent=1 // loop_pre_header
      _
    $region3: #{tpu_custom_call.1} parent=1 // loop_header
      %s13 = sphi 0, %s17
      %p14 = scmp.ge.s32.totalorder %s13, 4
      %s20 = sphi 0, %s32
      %s21 = sphi 0, %s28
      %s22 = sphi 0, %s20
      %s23 = sphi 0, %s21
      %s24 = sphi 0, %s22
      %s25 = sphi 0, %s23
      %s33 = sphi 0, %s33
      %s35 = sphi 0, %s33
      %s36 = sphi 0, %s35
      %s50 = sphi 0, %s36
      %s58 = sphi 0, %s60
      %s61 = sphi 0, %s58
      %s62 = sphi 0, %s61
      %s78 = sphi 0, %s62
      %s82 = sphi 0, %s82
      %s84 = sphi 0, %s82
      %s85 = sphi 0, %s84
      %s99 = sphi 0, %s85
    $region4: #{tpu_custom_call.1} parent=1 // loop_header_branch
      %16 = sbr.rel (%p14) target = $region8
    $region5: #{tpu_custom_call.1} parent=1 // loop_body
      %s18 = ssub.s32 %s13, 1
      %s19 = ssub.s32 %s13, 2
      %s26 = sadd.s32 1, %s21
      %p27 = scmp.ge.s32.totalorder %s26, 1
      %s28 = scalar_select %p27, 0, %s26
      %s29 = sadd.s32 1, %s20
      %s30 = scalar_select %p27, %s29, %s20
      %p31 = scmp.ge.s32.totalorder %s30, 2
      %s32 = scalar_select %p31, 0, %s30
      %s34 = sadd.s32 %s33, 1
      %p37 = scmp.eq.s32.totalorder %s13, 1
      %p38 = scmp.ne.s32.totalorder %s33, %s35
      %p39 = scmp.eq.s32.totalorder %s13, 0
      %p40 = por %p38, %p39
      %p41 = scmp.ne.s32.totalorder %s33, %s35
      %p42 = scmp.eq.s32.totalorder %s18, 1
      %p43 = por %p41, %p42
      %p44 = scmp.ne.s32.totalorder %s35, %s36
      %p45 = scmp.eq.s32.totalorder %s18, 0
      %p46 = por %p44, %p45
      %p47 = scmp.ne.s32.totalorder %s35, %s36
      %p48 = scmp.eq.s32.totalorder %s19, 1
      %p49 = por %p47, %p48
      %p51 = scmp.ne.s32.totalorder %s36, %s50
      %p52 = scmp.eq.s32.totalorder %s19, 0
      %p53 = por %p51, %p52
      %s54 = ssub.s32 %s20, %s32
      %s55 = ssub.s32 %s21, %s28
      %s56 = sor.u32 %s54, %s55
      %p57 = scmp.eq.s32.totalorder %s56, 0
      %s59 = sadd.s32 %s58, 1
      %s60 = scalar_select %p57, %s58, %s59
      %p63 = pneg %p57
      %p64 = scmp.eq.s32.totalorder %s13, 1
      %p65 = por %p63, %p64
      %p66 = scmp.ne.s32.totalorder %s58, %s61
      %p67 = scmp.eq.s32.totalorder %s13, 0
      %p68 = por %p66, %p67
      %p69 = scmp.ne.s32.totalorder %s58, %s61
      %p70 = scmp.eq.s32.totalorder %s18, 1
      %p71 = por %p69, %p70
      %p72 = scmp.ne.s32.totalorder %s61, %s62
      %p73 = scmp.eq.s32.totalorder %s18, 0
      %p74 = por %p72, %p73
      %p75 = scmp.ne.s32.totalorder %s61, %s62
      %p76 = scmp.eq.s32.totalorder %s19, 1
      %p77 = por %p75, %p76
      %p79 = scmp.ne.s32.totalorder %s62, %s78
      %p80 = scmp.eq.s32.totalorder %s19, 0
      %p81 = por %p79, %p80
      %s83 = sadd.s32 %s82, 1
      %p86 = scmp.eq.s32.totalorder %s13, 1
      %p87 = scmp.ne.s32.totalorder %s82, %s84
      %p88 = scmp.eq.s32.totalorder %s13, 0
      %p89 = por %p87, %p88
      %p90 = scmp.ne.s32.totalorder %s82, %s84
      %p91 = scmp.eq.s32.totalorder %s18, 1
      %p92 = por %p90, %p91
      %p93 = scmp.ne.s32.totalorder %s84, %s85
      %p94 = scmp.eq.s32.totalorder %s18, 0
      %p95 = por %p93, %p94
      %p96 = scmp.ne.s32.totalorder %s84, %s85
      %p97 = scmp.eq.s32.totalorder %s19, 1
      %p98 = por %p96, %p97
      %p100 = scmp.ne.s32.totalorder %s85, %s99
      %p101 = scmp.eq.s32.totalorder %s19, 0
      %p102 = por %p100, %p101
      %p103 = scmp.le.s32.totalorder 1, %s13
      %p104 = scmp.lt.s32.totalorder %s13, 3
      %p105 = pnand %p103, %p104
      %p106 = pneg %p105
      // Predicated region
      $region9: #{tpu_custom_call.1} parent=5 // pred_check
        _
      $region10: #{tpu_custom_call.1} parent=5 // pred_check_branch
        %108 = sbr.rel (%p105) target = $region12
      $region11: #{tpu_custom_call.1} parent=5 // pred_region
        %s109 = ssub.s32 %s13, 1
        // Predicated region
        $region13: #{tpu_custom_call.1} parent=11 // pred_check
          %p110 = pneg %p46
        $region14: #{tpu_custom_call.1} parent=11 // pred_check_branch
          %112 = sbr.rel (%p110) target = $region16
        $region15: #{tpu_custom_call.1} parent=11 // pred_region
          %114 = vsyncadd [#allocation5], 0
          %s116 = sshll.u32 %s0, 4
          %s117 = int_to_ptr.hbm [resolvable:$true] %s116
          %119 = dma.hbm_to_smem %s117, 16, [#allocation2], [#allocation5]
        $region16: #{tpu_custom_call.1} parent=11 // pred_fallthru
          _
      $region12: #{tpu_custom_call.1} parent=5 // pred_fallthru
        _
      %p120 = scmp.lt.s32.totalorder %s13, 2
      // Predicated region
      $region17: #{tpu_custom_call.1} parent=5 // pred_check
        %p121 = pneg %p120
      $region18: #{tpu_custom_call.1} parent=5 // pred_check_branch
        %123 = sbr.rel (%p121) target = $region20
      $region19: #{tpu_custom_call.1} parent=5 // pred_region
        // Predicated region
        $region21: #{tpu_custom_call.1} parent=19 // pred_check
          %p124 = pneg %p68
        $region22: #{tpu_custom_call.1} parent=19 // pred_check_branch
          %126 = sbr.rel (%p124) target = $region24
        $region23: #{tpu_custom_call.1} parent=19 // pred_region
          %s127 = sand.u32 %s58, 1
          %s128 = scalar_lea.sflag [#allocation3], %s127
          %s129 = sand.u32 %s58, 1
          %s130 = smul.addr %s129, 8
          %s131 = scalar_lea.vmem [#allocation6], %s130
          %s132 = smul.u32 2, %s21
          %134 = vsyncadd %s128, 0
          %s135 = smul.addr %s20, 2
          %s136 = sadd.s32 %s132, %s135
          %s137 = smul.addr %s136, 4
          %s138 = scalar_lea.hbm %s1, %s137
          %s140 = sshll.u32 %s138, 4
          %s141 = int_to_ptr.hbm [resolvable:$true] %s140
          %s142 = sshll.u32 %s131, 4
          %s143 = int_to_ptr.vmem [resolvable:$true] %s142
          %145 = dma.hbm_to_vmem [thread:$0]  %s141, 128, %s143, %s128
        $region24: #{tpu_custom_call.1} parent=19 // pred_fallthru
          _
      $region20: #{tpu_custom_call.1} parent=5 // pred_fallthru
        _
      %p146 = scmp.le.s32.totalorder 1, %s13
      %p147 = scmp.lt.s32.totalorder %s13, 3
      %p148 = pnand %p146, %p147
      %p149 = pneg %p148
      // Predicated region
      $region25: #{tpu_custom_call.1} parent=5 // pred_check
        _
      $region26: #{tpu_custom_call.1} parent=5 // pred_check_branch
        %151 = sbr.rel (%p148) target = $region28
      $region27: #{tpu_custom_call.1} parent=5 // pred_region
        %s152 = ssub.s32 %s13, 1
        // Predicated region
        $region29: #{tpu_custom_call.1} parent=27 // pred_check
          %p153 = pneg %p46
        $region30: #{tpu_custom_call.1} parent=27 // pred_check_branch
          %155 = sbr.rel (%p153) target = $region32
        $region31: #{tpu_custom_call.1} parent=27 // pred_region
          %157 = dma.done [#allocation5], 16
        $region32: #{tpu_custom_call.1} parent=27 // pred_fallthru
          _
        %s158 = sand.u32 %s61, 1
        %s159 = scalar_lea.sflag [#allocation3], %s158
        %s160 = sand.u32 %s61, 1
        %s161 = smul.addr %s160, 8
        %s162 = scalar_lea.vmem [#allocation6], %s161
        // Predicated region
        $region33: #{tpu_custom_call.1} parent=27 // pred_check
          %p163 = pneg %p74
        $region34: #{tpu_custom_call.1} parent=27 // pred_check_branch
          %165 = sbr.rel (%p163) target = $region36
        $region35: #{tpu_custom_call.1} parent=27 // pred_region
          %167 = dma.done %s159, 128
        $region36: #{tpu_custom_call.1} parent=27 // pred_fallthru
          _
        %168 = sfence
        %p169 = pneg %p46
        %p170 = pneg %p43
        %s171 = sand.u32 %s61, 1
        %s172 = scalar_lea.sflag [#allocation3], %s171
        %s173 = sand.u32 %s61, 1
        %s174 = smul.addr %s173, 8
        %s175 = scalar_lea.vmem [#allocation6], %s174
        %p176 = pneg %p74
        %p177 = pneg %p71
        %p178 = pneg %p95
        %p179 = pneg %p92
        %s180 = smul.u32 2, %s23
        %p181 = scmp.eq.s32.totalorder %s22, 0
        %p182 = scmp.eq.s32.totalorder %s23, 0
        %p183 = pnand %p181, %p182
        %p184 = pneg %p183
        // Predicated region
        $region37: #{tpu_custom_call.1} parent=27 // pred_check
          _
        $region38: #{tpu_custom_call.1} parent=27 // pred_check_branch
          %186 = sbr.rel (%p183) target = $region40
        $region39: #{tpu_custom_call.1} parent=27 // pred_region
          %187 = vst [vmem:[#allocation7] sm:$0xff] 0.0
          %188 = vst [vmem:[#allocation7 + $0x8] sm:$0xff] 0.0
        $region40: #{tpu_custom_call.1} parent=27 // pred_fallthru
          _
        %v189 = vld [vmem:[%s162] sm:$0xff]
        %s190 = sld [smem:[#allocation2]]
        %v191 = vstv %s190
        %v192 = vmul.f32 %v191, %v189
        %s193 = sld [smem:[#allocation2 + $0x1]]
        %v194 = vstv %s193
        %v195 = vmul.f32 %v194, %v189
        %v197 = vrot.slane %v195, 5
        %v198 = vrot.slane %v197, 4
        %v200 = vadd.f32 %v192, %v198
        %s201 = sld [smem:[#allocation2 + $0x2]]
        %v202 = vstv %s201
        %v203 = vmul.f32 %v202, %v189
        %v205 = vrot.slane %v203, 6
        %v206 = vrot.slane %v205, 4
        %v208 = vadd.f32 %v200, %v206
        %s209 = sld [smem:[#allocation2 + $0x3]]
        %v210 = vstv %s209
        %v211 = vmul.f32 %v210, %v189
        %v213 = vrot.slane %v211, 7
        %v214 = vrot.slane %v213, 4
        %v216 = vadd.f32 %v208, %v214
        %v217 = vld [vmem:[#allocation7] ss:$8 sm:$0x3]
        %v219 = vrot.slane %v216, 3
        %vm220 = vcmask 1040384
        %v221 = vsel %vm220, %v216, %v219
        %v223 = vadd.f32 %v217, %v221
        %v224 = vlaneseq
        %vm225 = vcmp.ge.s32.totalorder %v224, 0
        %vm226 = vcmp.lt.s32.totalorder %v224, 256
        %vm227 = vmand %vm225, %vm226
        %228 = vst.msk [vmem:[#allocation7] ss:$8 sm:$0x3] %vm227, %v223
        %229 = vst.msk [vmem:[#allocation7] ss:$8 sm:$0x0] %vm227, %v223
        %s230 = scalar_lea.vmem [#allocation7], 4
        %v231 = vld [vmem:[%s230] ss:$8 sm:$0x3]
        %v232 = vmul.f32 %v216, %v216
        %v234 = vrot.slane %v232, 3
        %v235 = vsel %vm220, %v232, %v234
        %v237 = vadd.f32 %v231, %v235
        %238 = vst.msk [vmem:[%s230] ss:$8 sm:$0x3] %vm227, %v237
        %239 = vst.msk [vmem:[%s230] ss:$8 sm:$0x0] %vm227, %v237
        %s240 = sld [smem:[#allocation2 + $0x4]]
        %v241 = vstv %s240
        %v242 = vmul.f32 %v241, %v189
        %s243 = sld [smem:[#allocation2 + $0x5]]
        %v244 = vstv %s243
        %v245 = vmul.f32 %v244, %v189
        %v247 = vrot.slane %v245, 5
        %v248 = vrot.slane %v247, 4
        %v250 = vadd.f32 %v242, %v248
        %s251 = sld [smem:[#allocation2 + $0x6]]
        %v252 = vstv %s251
        %v253 = vmul.f32 %v252, %v189
        %v255 = vrot.slane %v253, 6
        %v256 = vrot.slane %v255, 4
        %v258 = vadd.f32 %v250, %v256
        %s259 = sld [smem:[#allocation2 + $0x7]]
        %v260 = vstv %s259
        %v261 = vmul.f32 %v260, %v189
        %v263 = vrot.slane %v261, 7
        %v264 = vrot.slane %v263, 4
        %v266 = vadd.f32 %v258, %v264
        %s267 = scalar_lea.vmem [#allocation7], 1
        %v268 = vld [vmem:[%s267] ss:$8 sm:$0x3]
        %v270 = vrot.slane %v266, 3
        %v271 = vsel %vm220, %v266, %v270
        %v273 = vadd.f32 %v268, %v271
        %274 = vst.msk [vmem:[%s267] ss:$8 sm:$0x3] %vm227, %v273
        %275 = vst.msk [vmem:[%s267] ss:$8 sm:$0x0] %vm227, %v273
        %s276 = scalar_lea.vmem [#allocation7], 5
        %v277 = vld [vmem:[%s276] ss:$8 sm:$0x3]
        %v278 = vmul.f32 %v266, %v266
        %v280 = vrot.slane %v278, 3
        %v281 = vsel %vm220, %v278, %v280
        %v283 = vadd.f32 %v277, %v281
        %284 = vst.msk [vmem:[%s276] ss:$8 sm:$0x3] %vm227, %v283
        %285 = vst.msk [vmem:[%s276] ss:$8 sm:$0x0] %vm227, %v283
        %s286 = sld [smem:[#allocation2 + $0x8]]
        %v287 = vstv %s286
        %v288 = vmul.f32 %v287, %v189
        %s289 = sld [smem:[#allocation2 + $0x9]]
        %v290 = vstv %s289
        %v291 = vmul.f32 %v290, %v189
        %v293 = vrot.slane %v291, 5
        %v294 = vrot.slane %v293, 4
        %v296 = vadd.f32 %v288, %v294
        %s297 = sld [smem:[#allocation2 + $0xa]]
        %v298 = vstv %s297
        %v299 = vmul.f32 %v298, %v189
        %v301 = vrot.slane %v299, 6
        %v302 = vrot.slane %v301, 4
        %v304 = vadd.f32 %v296, %v302
        %s305 = sld [smem:[#allocation2 + $0xb]]
        %v306 = vstv %s305
        %v307 = vmul.f32 %v306, %v189
        %v309 = vrot.slane %v307, 7
        %v310 = vrot.slane %v309, 4
        %v312 = vadd.f32 %v304, %v310
        %s313 = scalar_lea.vmem [#allocation7], 2
        %v314 = vld [vmem:[%s313] ss:$8 sm:$0x3]
        %v316 = vrot.slane %v312, 3
        %v317 = vsel %vm220, %v312, %v316
        %v319 = vadd.f32 %v314, %v317
        %320 = vst.msk [vmem:[%s313] ss:$8 sm:$0x3] %vm227, %v319
        %321 = vst.msk [vmem:[%s313] ss:$8 sm:$0x0] %vm227, %v319
        %s322 = scalar_lea.vmem [#allocation7], 6
        %v323 = vld [vmem:[%s322] ss:$8 sm:$0x3]
        %v324 = vmul.f32 %v312, %v312
        %v326 = vrot.slane %v324, 3
        %v327 = vsel %vm220, %v324, %v326
        %v329 = vadd.f32 %v323, %v327
        %330 = vst.msk [vmem:[%s322] ss:$8 sm:$0x3] %vm227, %v329
        %331 = vst.msk [vmem:[%s322] ss:$8 sm:$0x0] %vm227, %v329
        %s332 = sld [smem:[#allocation2 + $0xc]]
        %v333 = vstv %s332
        %v334 = vmul.f32 %v333, %v189
        %s335 = sld [smem:[#allocation2 + $0xd]]
        %v336 = vstv %s335
        %v337 = vmul.f32 %v336, %v189
        %v339 = vrot.slane %v337, 5
        %v340 = vrot.slane %v339, 4
        %v342 = vadd.f32 %v334, %v340
        %s343 = sld [smem:[#allocation2 + $0xe]]
        %v344 = vstv %s343
        %v345 = vmul.f32 %v344, %v189
        %v347 = vrot.slane %v345, 6
        %v348 = vrot.slane %v347, 4
        %v350 = vadd.f32 %v342, %v348
        %s351 = sld [smem:[#allocation2 + $0xf]]
        %v352 = vstv %s351
        %v353 = vmul.f32 %v352, %v189
        %v355 = vrot.slane %v353, 7
        %v356 = vrot.slane %v355, 4
        %v358 = vadd.f32 %v350, %v356
        %s359 = scalar_lea.vmem [#allocation7], 3
        %v360 = vld [vmem:[%s359] ss:$8 sm:$0x3]
        %v362 = vrot.slane %v358, 3
        %v363 = vsel %vm220, %v358, %v362
        %v365 = vadd.f32 %v360, %v363
        %366 = vst.msk [vmem:[%s359] ss:$8 sm:$0x3] %vm227, %v365
        %367 = vst.msk [vmem:[%s359] ss:$8 sm:$0x0] %vm227, %v365
        %s368 = scalar_lea.vmem [#allocation7], 7
        %v369 = vld [vmem:[%s368] ss:$8 sm:$0x3]
        %v370 = vmul.f32 %v358, %v358
        %v372 = vrot.slane %v370, 3
        %v373 = vsel %vm220, %v370, %v372
        %v375 = vadd.f32 %v369, %v373
        %376 = vst.msk [vmem:[%s368] ss:$8 sm:$0x3] %vm227, %v375
        %377 = vst.msk [vmem:[%s368] ss:$8 sm:$0x0] %vm227, %v375
        // Predicated region
        $region41: #{tpu_custom_call.1} parent=27 // pred_check
          %p378 = pneg %p92
        $region42: #{tpu_custom_call.1} parent=27 // pred_check_branch
          %380 = sbr.rel (%p378) target = $region44
        $region43: #{tpu_custom_call.1} parent=27 // pred_region
          %382 = vsyncadd [#allocation4], 0
          %s384 = sshll.u32 [#allocation7], 4
          %s385 = int_to_ptr.vmem [resolvable:$true] %s384
          %s386 = sshll.u32 %s2, 4
          %s387 = int_to_ptr.hbm [resolvable:$true] %s386
          %389 = dma.vmem_to_hbm [thread:$0]  %s385, 256, %s387, [#allocation4]
        $region44: #{tpu_custom_call.1} parent=27 // pred_fallthru
          _
        // Predicated region
        $region45: #{tpu_custom_call.1} parent=27 // pred_check
          %p390 = pneg %p92
        $region46: #{tpu_custom_call.1} parent=27 // pred_check_branch
          %392 = sbr.rel (%p390) target = $region48
        $region47: #{tpu_custom_call.1} parent=27 // pred_region
          %394 = dma.done [#allocation4], 256
        $region48: #{tpu_custom_call.1} parent=27 // pred_fallthru
          _
      $region28: #{tpu_custom_call.1} parent=5 // pred_fallthru
        _
      %p395 = scmp.le.s32.totalorder 2, %s13
      // Predicated region
      $region49: #{tpu_custom_call.1} parent=5 // pred_check
        %p396 = pneg %p395
      $region50: #{tpu_custom_call.1} parent=5 // pred_check_branch
        %398 = sbr.rel (%p396) target = $region52
      $region51: #{tpu_custom_call.1} parent=5 // pred_region
        %s399 = ssub.s32 %s13, 2
      $region52: #{tpu_custom_call.1} parent=5 // pred_fallthru
        _
    $region6: #{tpu_custom_call.1} parent=1 // loop_footer
      %s17 = sadd.s32 1, %s13
    $region7: #{tpu_custom_call.1} parent=1 // loop_footer_branch
      %12 = sbr.rel target = $region3
    $region8: #{tpu_custom_call.1} parent=1 // loop_exit
      _
    %400 = vsyncpa [#allocation3], 1
    %s401 = scalar_lea.sflag [#allocation3], 1
    %402 = vsyncpa %s401, 1
    %403 = vsyncpa [#allocation4], 1
    %s404 = scalar_lea.sflag [#allocation4], 1
    %405 = vsyncpa %s404, 1
    %406 = vsyncpa [#allocation5], 1
    %s407 = scalar_lea.sflag [#allocation5], 1
    %408 = vsyncpa %s407, 1

</llo_original>
